<compile_context>
chip_gen: v6e
topology: v6e:2x2x1
jax: 0.10.0
libtpu: 0.0.40
codegen_flags: <defaults>
</compile_context>

<pallas_src>
import jax
import jax.numpy as jnp
from jax.experimental import pallas as pl
from jax.experimental.pallas import tpu as pltpu

INPUT_SIZE = 2
HIDDEN_SIZE = 10
OUTPUT_SIZE = 1

# Packed-parameter offsets (single 1-D f32 table, resident in SMEM).
_W1_OFF = 0                                     # w1[j, k] at _W1_OFF + j*INPUT_SIZE + k
_B1_OFF = _W1_OFF + HIDDEN_SIZE * INPUT_SIZE    # b1[j]
_W2_OFF = _B1_OFF + HIDDEN_SIZE                 # w2[0, j]
_B2_OFF = _W2_OFF + HIDDEN_SIZE                 # b2[0]
_N_PARAMS = _B2_OFF + OUTPUT_SIZE               # 41 scalars total


def mlp_kernel(params_ref, x_ref, o_ref):
    # x_ref: (INPUT_SIZE, tile_n) f32 -- batch on the lane (last) axis.
    x0 = x_ref[0:1, :]
    x1 = x_ref[1:2, :]

    acc = jnp.zeros_like(x0)                       # (1, tile_n) fc2 accumulator
    for j in range(HIDDEN_SIZE):                   # unrolled: 10 hidden units, pure VPU
        hj = (params_ref[_W1_OFF + j * INPUT_SIZE] * x0
              + params_ref[_W1_OFF + j * INPUT_SIZE + 1] * x1
              + params_ref[_B1_OFF + j])
        hj = jnp.maximum(hj, 0.0)                  # ReLU
        acc = acc + params_ref[_W2_OFF + j] * hj   # fc2 weighted sum

    z = acc + params_ref[_B2_OFF]
    # Sigmoid: exp on the EUP; exact reciprocal keeps the 1e-5 tolerance.
    o_ref[...] = pl.reciprocal(1.0 + jnp.exp(-z), approx=False)


def pack_params(w1, b1, w2, b2):
    """Pack PyTorch-layout params ((out,in) weights, (out,) biases) into one f32 table."""
    return jnp.concatenate([
        w1.reshape(-1), b1.reshape(-1), w2.reshape(-1), b2.reshape(-1)
    ]).astype(jnp.float32)


def binary_classifier_forward(x, w1, b1, w2, b2, *, tile_n=8192):
    """x: (N, INPUT_SIZE) any float dtype. Returns (N, OUTPUT_SIZE) f32 in [0, 1].

    Weights/biases are in PyTorch layout: w1 (HIDDEN, IN), b1 (HIDDEN,),
    w2 (OUT, HIDDEN), b2 (OUT,).
    """
    n = x.shape[0]
    assert x.shape[1] == INPUT_SIZE

    # Transposed, lane-dense layout: (features, batch) with batch padded to a
    # multiple of the (128-aligned) tile size.
    x_t = x.astype(jnp.float32).T                          # (INPUT_SIZE, n)
    n_lanes = pl.cdiv(n, 128) * 128
    tile = max(128, (min(tile_n, n_lanes) // 128) * 128)   # 128-multiple tile <= padded n
    n_pad = pl.cdiv(n, tile) * tile
    if n_pad != n:
        x_t = jnp.pad(x_t, ((0, 0), (0, n_pad - n)))

    params = pack_params(w1, b1, w2, b2)                   # (_N_PARAMS,) f32
    grid = (n_pad // tile,)

    out_t = pl.pallas_call(
        mlp_kernel,
        out_shape=jax.ShapeDtypeStruct((OUTPUT_SIZE, n_pad), jnp.float32),
        grid_spec=pltpu.PrefetchScalarGridSpec(
            num_scalar_prefetch=0,
            grid=grid,
            in_specs=[
                # all 41 parameters in one SMEM-resident scalar table
                pl.BlockSpec(memory_space=pltpu.MemorySpace.SMEM),
                # lane-dense batch tile of the (transposed) input
                pl.BlockSpec((INPUT_SIZE, tile), lambda i: (0, i)),
            ],
            out_specs=pl.BlockSpec((OUTPUT_SIZE, tile), lambda i: (0, i)),
        ),
        compiler_params=pltpu.CompilerParams(
            dimension_semantics=("parallel",),
        ),
    )(params, x_t)

    return out_t[:, :n].T                                  # back to (N, OUTPUT_SIZE)


def init_params(key):
    """nn.Linear-style U(-1/sqrt(fan_in), 1/sqrt(fan_in)) init, PyTorch (out, in) layout."""
    k1, k2, k3, k4 = jax.random.split(key, 4)
    bound1 = 1.0 / jnp.sqrt(jnp.float32(INPUT_SIZE))
    bound2 = 1.0 / jnp.sqrt(jnp.float32(HIDDEN_SIZE))
    w1 = jax.random.uniform(k1, (HIDDEN_SIZE, INPUT_SIZE), jnp.float32,
                            minval=-bound1, maxval=bound1)
    b1 = jax.random.uniform(k2, (HIDDEN_SIZE,), jnp.float32,
                            minval=-bound1, maxval=bound1)
    w2 = jax.random.uniform(k3, (OUTPUT_SIZE, HIDDEN_SIZE), jnp.float32,
                            minval=-bound2, maxval=bound2)
    b2 = jax.random.uniform(k4, (OUTPUT_SIZE,), jnp.float32,
                            minval=-bound2, maxval=bound2)
    return w1, b1, w2, b2


def reference_forward(x, w1, b1, w2, b2):
    h = jnp.maximum(x.astype(jnp.float32) @ w1.T + b1, 0.0)
    return jax.nn.sigmoid(h @ w2.T + b2)


if __name__ == "__main__":
    key = jax.random.PRNGKey(0)
    k_params, k_x1, k_x2 = jax.random.split(key, 3)

    w1, b1, w2, b2 = init_params(k_params)

    # Small batch of 2-feature points (input_size=2), as in the PyTorch module.
    N = 8
    x = jax.random.normal(k_x1, (N, INPUT_SIZE), dtype=jnp.float32)
    out = jax.block_until_ready(binary_classifier_forward(x, w1, b1, w2, b2))
    ref = reference_forward(x, w1, b1, w2, b2)
    assert out.shape == (N, OUTPUT_SIZE)
    assert jnp.allclose(out, ref, atol=1e-5, rtol=1e-5), "mismatch vs JAX reference"

    # Non-multiple-of-128 batch exercises the padded-remainder path.
    N2 = 37
    x2 = jax.random.normal(k_x2, (N2, INPUT_SIZE), dtype=jnp.float32)
    out2 = jax.block_until_ready(binary_classifier_forward(x2, w1, b1, w2, b2))
    ref2 = reference_forward(x2, w1, b1, w2, b2)
    assert out2.shape == (N2, OUTPUT_SIZE)
    assert jnp.allclose(out2, ref2, atol=1e-5, rtol=1e-5), "mismatch vs JAX reference"

    print("KERNEL_OK")
</pallas_src>

<mosaic_0001>
module attributes {stable_mosaic.version = 11 : i64} {
  func.func @mlp_kernel(%arg0: i32, %arg1: memref<41xf32, #tpu.memory_space<smem>>, %arg2: memref<2x128xf32, #tpu.memory_space<vmem>>, %arg3: memref<1x128xf32, #tpu.memory_space<vmem>>) attributes {dimension_semantics = [#tpu.dimension_semantics<parallel>], iteration_bounds = array<i64: 1>, scalar_prefetch = 0 : i64, scratch_operands = 0 : i64, tpu.core_type = #tpu.core_type<tc>, window_params = [{transform_indices = @transform_0, window_bounds = array<i64: 41>}, {transform_indices = @transform_1, window_bounds = array<i64: 2, 128>}, {transform_indices = @transform_2, window_bounds = array<i64: 1, 128>}]} {
    %c0 = arith.constant 0 : index
    %c0_0 = arith.constant 0 : index
    %0 = vector.load %arg2[%c0, %c0_0] : memref<2x128xf32, #tpu.memory_space<vmem>>, vector<1x128xf32>
    %c1 = arith.constant 1 : index
    %c0_1 = arith.constant 0 : index
    %1 = vector.load %arg2[%c1, %c0_1] : memref<2x128xf32, #tpu.memory_space<vmem>>, vector<1x128xf32>
    %cst = arith.constant 0.000000e+00 : f32
    %2 = vector.broadcast %cst : f32 to vector<1x128xf32>
    %c0_2 = arith.constant 0 : index
    %3 = memref.load %arg1[%c0_2] : memref<41xf32, #tpu.memory_space<smem>>
    %4 = vector.broadcast %3 : f32 to vector<1x128xf32>
    %5 = arith.mulf %4, %0 : vector<1x128xf32>
    %c1_3 = arith.constant 1 : index
    %6 = memref.load %arg1[%c1_3] : memref<41xf32, #tpu.memory_space<smem>>
    %7 = vector.broadcast %6 : f32 to vector<1x128xf32>
    %8 = arith.mulf %7, %1 : vector<1x128xf32>
    %9 = arith.addf %5, %8 : vector<1x128xf32>
    %c20 = arith.constant 20 : index
    %10 = memref.load %arg1[%c20] : memref<41xf32, #tpu.memory_space<smem>>
    %11 = vector.broadcast %10 : f32 to vector<1x128xf32>
    %12 = arith.addf %9, %11 : vector<1x128xf32>
    %cst_4 = arith.constant 0.000000e+00 : f32
    %13 = vector.broadcast %cst_4 : f32 to vector<1x128xf32>
    %14 = arith.maximumf %12, %13 : vector<1x128xf32>
    %c30 = arith.constant 30 : index
    %15 = memref.load %arg1[%c30] : memref<41xf32, #tpu.memory_space<smem>>
    %16 = vector.broadcast %15 : f32 to vector<1x128xf32>
    %17 = arith.mulf %16, %14 : vector<1x128xf32>
    %18 = arith.addf %2, %17 : vector<1x128xf32>
    %c2 = arith.constant 2 : index
    %19 = memref.load %arg1[%c2] : memref<41xf32, #tpu.memory_space<smem>>
    %20 = vector.broadcast %19 : f32 to vector<1x128xf32>
    %21 = arith.mulf %20, %0 : vector<1x128xf32>
    %c3 = arith.constant 3 : index
    %22 = memref.load %arg1[%c3] : memref<41xf32, #tpu.memory_space<smem>>
    %23 = vector.broadcast %22 : f32 to vector<1x128xf32>
    %24 = arith.mulf %23, %1 : vector<1x128xf32>
    %25 = arith.addf %21, %24 : vector<1x128xf32>
    %c21 = arith.constant 21 : index
    %26 = memref.load %arg1[%c21] : memref<41xf32, #tpu.memory_space<smem>>
    %27 = vector.broadcast %26 : f32 to vector<1x128xf32>
    %28 = arith.addf %25, %27 : vector<1x128xf32>
    %cst_5 = arith.constant 0.000000e+00 : f32
    %29 = vector.broadcast %cst_5 : f32 to vector<1x128xf32>
    %30 = arith.maximumf %28, %29 : vector<1x128xf32>
    %c31 = arith.constant 31 : index
    %31 = memref.load %arg1[%c31] : memref<41xf32, #tpu.memory_space<smem>>
    %32 = vector.broadcast %31 : f32 to vector<1x128xf32>
    %33 = arith.mulf %32, %30 : vector<1x128xf32>
    %34 = arith.addf %18, %33 : vector<1x128xf32>
    %c4 = arith.constant 4 : index
    %35 = memref.load %arg1[%c4] : memref<41xf32, #tpu.memory_space<smem>>
    %36 = vector.broadcast %35 : f32 to vector<1x128xf32>
    %37 = arith.mulf %36, %0 : vector<1x128xf32>
    %c5 = arith.constant 5 : index
    %38 = memref.load %arg1[%c5] : memref<41xf32, #tpu.memory_space<smem>>
    %39 = vector.broadcast %38 : f32 to vector<1x128xf32>
    %40 = arith.mulf %39, %1 : vector<1x128xf32>
    %41 = arith.addf %37, %40 : vector<1x128xf32>
    %c22 = arith.constant 22 : index
    %42 = memref.load %arg1[%c22] : memref<41xf32, #tpu.memory_space<smem>>
    %43 = vector.broadcast %42 : f32 to vector<1x128xf32>
    %44 = arith.addf %41, %43 : vector<1x128xf32>
    %cst_6 = arith.constant 0.000000e+00 : f32
    %45 = vector.broadcast %cst_6 : f32 to vector<1x128xf32>
    %46 = arith.maximumf %44, %45 : vector<1x128xf32>
    %c32 = arith.constant 32 : index
    %47 = memref.load %arg1[%c32] : memref<41xf32, #tpu.memory_space<smem>>
    %48 = vector.broadcast %47 : f32 to vector<1x128xf32>
    %49 = arith.mulf %48, %46 : vector<1x128xf32>
    %50 = arith.addf %34, %49 : vector<1x128xf32>
    %c6 = arith.constant 6 : index
    %51 = memref.load %arg1[%c6] : memref<41xf32, #tpu.memory_space<smem>>
    %52 = vector.broadcast %51 : f32 to vector<1x128xf32>
    %53 = arith.mulf %52, %0 : vector<1x128xf32>
    %c7 = arith.constant 7 : index
    %54 = memref.load %arg1[%c7] : memref<41xf32, #tpu.memory_space<smem>>
    %55 = vector.broadcast %54 : f32 to vector<1x128xf32>
    %56 = arith.mulf %55, %1 : vector<1x128xf32>
    %57 = arith.addf %53, %56 : vector<1x128xf32>
    %c23 = arith.constant 23 : index
    %58 = memref.load %arg1[%c23] : memref<41xf32, #tpu.memory_space<smem>>
    %59 = vector.broadcast %58 : f32 to vector<1x128xf32>
    %60 = arith.addf %57, %59 : vector<1x128xf32>
    %cst_7 = arith.constant 0.000000e+00 : f32
    %61 = vector.broadcast %cst_7 : f32 to vector<1x128xf32>
    %62 = arith.maximumf %60, %61 : vector<1x128xf32>
    %c33 = arith.constant 33 : index
    %63 = memref.load %arg1[%c33] : memref<41xf32, #tpu.memory_space<smem>>
    %64 = vector.broadcast %63 : f32 to vector<1x128xf32>
    %65 = arith.mulf %64, %62 : vector<1x128xf32>
    %66 = arith.addf %50, %65 : vector<1x128xf32>
    %c8 = arith.constant 8 : index
    %67 = memref.load %arg1[%c8] : memref<41xf32, #tpu.memory_space<smem>>
    %68 = vector.broadcast %67 : f32 to vector<1x128xf32>
    %69 = arith.mulf %68, %0 : vector<1x128xf32>
    %c9 = arith.constant 9 : index
    %70 = memref.load %arg1[%c9] : memref<41xf32, #tpu.memory_space<smem>>
    %71 = vector.broadcast %70 : f32 to vector<1x128xf32>
    %72 = arith.mulf %71, %1 : vector<1x128xf32>
    %73 = arith.addf %69, %72 : vector<1x128xf32>
    %c24 = arith.constant 24 : index
    %74 = memref.load %arg1[%c24] : memref<41xf32, #tpu.memory_space<smem>>
    %75 = vector.broadcast %74 : f32 to vector<1x128xf32>
    %76 = arith.addf %73, %75 : vector<1x128xf32>
    %cst_8 = arith.constant 0.000000e+00 : f32
    %77 = vector.broadcast %cst_8 : f32 to vector<1x128xf32>
    %78 = arith.maximumf %76, %77 : vector<1x128xf32>
    %c34 = arith.constant 34 : index
    %79 = memref.load %arg1[%c34] : memref<41xf32, #tpu.memory_space<smem>>
    %80 = vector.broadcast %79 : f32 to vector<1x128xf32>
    %81 = arith.mulf %80, %78 : vector<1x128xf32>
    %82 = arith.addf %66, %81 : vector<1x128xf32>
    %c10 = arith.constant 10 : index
    %83 = memref.load %arg1[%c10] : memref<41xf32, #tpu.memory_space<smem>>
    %84 = vector.broadcast %83 : f32 to vector<1x128xf32>
    %85 = arith.mulf %84, %0 : vector<1x128xf32>
    %c11 = arith.constant 11 : index
    %86 = memref.load %arg1[%c11] : memref<41xf32, #tpu.memory_space<smem>>
    %87 = vector.broadcast %86 : f32 to vector<1x128xf32>
    %88 = arith.mulf %87, %1 : vector<1x128xf32>
    %89 = arith.addf %85, %88 : vector<1x128xf32>
    %c25 = arith.constant 25 : index
    %90 = memref.load %arg1[%c25] : memref<41xf32, #tpu.memory_space<smem>>
    %91 = vector.broadcast %90 : f32 to vector<1x128xf32>
    %92 = arith.addf %89, %91 : vector<1x128xf32>
    %cst_9 = arith.constant 0.000000e+00 : f32
    %93 = vector.broadcast %cst_9 : f32 to vector<1x128xf32>
    %94 = arith.maximumf %92, %93 : vector<1x128xf32>
    %c35 = arith.constant 35 : index
    %95 = memref.load %arg1[%c35] : memref<41xf32, #tpu.memory_space<smem>>
    %96 = vector.broadcast %95 : f32 to vector<1x128xf32>
    %97 = arith.mulf %96, %94 : vector<1x128xf32>
    %98 = arith.addf %82, %97 : vector<1x128xf32>
    %c12 = arith.constant 12 : index
    %99 = memref.load %arg1[%c12] : memref<41xf32, #tpu.memory_space<smem>>
    %100 = vector.broadcast %99 : f32 to vector<1x128xf32>
    %101 = arith.mulf %100, %0 : vector<1x128xf32>
    %c13 = arith.constant 13 : index
    %102 = memref.load %arg1[%c13] : memref<41xf32, #tpu.memory_space<smem>>
    %103 = vector.broadcast %102 : f32 to vector<1x128xf32>
    %104 = arith.mulf %103, %1 : vector<1x128xf32>
    %105 = arith.addf %101, %104 : vector<1x128xf32>
    %c26 = arith.constant 26 : index
    %106 = memref.load %arg1[%c26] : memref<41xf32, #tpu.memory_space<smem>>
    %107 = vector.broadcast %106 : f32 to vector<1x128xf32>
    %108 = arith.addf %105, %107 : vector<1x128xf32>
    %cst_10 = arith.constant 0.000000e+00 : f32
    %109 = vector.broadcast %cst_10 : f32 to vector<1x128xf32>
    %110 = arith.maximumf %108, %109 : vector<1x128xf32>
    %c36 = arith.constant 36 : index
    %111 = memref.load %arg1[%c36] : memref<41xf32, #tpu.memory_space<smem>>
    %112 = vector.broadcast %111 : f32 to vector<1x128xf32>
    %113 = arith.mulf %112, %110 : vector<1x128xf32>
    %114 = arith.addf %98, %113 : vector<1x128xf32>
    %c14 = arith.constant 14 : index
    %115 = memref.load %arg1[%c14] : memref<41xf32, #tpu.memory_space<smem>>
    %116 = vector.broadcast %115 : f32 to vector<1x128xf32>
    %117 = arith.mulf %116, %0 : vector<1x128xf32>
    %c15 = arith.constant 15 : index
    %118 = memref.load %arg1[%c15] : memref<41xf32, #tpu.memory_space<smem>>
    %119 = vector.broadcast %118 : f32 to vector<1x128xf32>
    %120 = arith.mulf %119, %1 : vector<1x128xf32>
    %121 = arith.addf %117, %120 : vector<1x128xf32>
    %c27 = arith.constant 27 : index
    %122 = memref.load %arg1[%c27] : memref<41xf32, #tpu.memory_space<smem>>
    %123 = vector.broadcast %122 : f32 to vector<1x128xf32>
    %124 = arith.addf %121, %123 : vector<1x128xf32>
    %cst_11 = arith.constant 0.000000e+00 : f32
    %125 = vector.broadcast %cst_11 : f32 to vector<1x128xf32>
    %126 = arith.maximumf %124, %125 : vector<1x128xf32>
    %c37 = arith.constant 37 : index
    %127 = memref.load %arg1[%c37] : memref<41xf32, #tpu.memory_space<smem>>
    %128 = vector.broadcast %127 : f32 to vector<1x128xf32>
    %129 = arith.mulf %128, %126 : vector<1x128xf32>
    %130 = arith.addf %114, %129 : vector<1x128xf32>
    %c16 = arith.constant 16 : index
    %131 = memref.load %arg1[%c16] : memref<41xf32, #tpu.memory_space<smem>>
    %132 = vector.broadcast %131 : f32 to vector<1x128xf32>
    %133 = arith.mulf %132, %0 : vector<1x128xf32>
    %c17 = arith.constant 17 : index
    %134 = memref.load %arg1[%c17] : memref<41xf32, #tpu.memory_space<smem>>
    %135 = vector.broadcast %134 : f32 to vector<1x128xf32>
    %136 = arith.mulf %135, %1 : vector<1x128xf32>
    %137 = arith.addf %133, %136 : vector<1x128xf32>
    %c28 = arith.constant 28 : index
    %138 = memref.load %arg1[%c28] : memref<41xf32, #tpu.memory_space<smem>>
    %139 = vector.broadcast %138 : f32 to vector<1x128xf32>
    %140 = arith.addf %137, %139 : vector<1x128xf32>
    %cst_12 = arith.constant 0.000000e+00 : f32
    %141 = vector.broadcast %cst_12 : f32 to vector<1x128xf32>
    %142 = arith.maximumf %140, %141 : vector<1x128xf32>
    %c38 = arith.constant 38 : index
    %143 = memref.load %arg1[%c38] : memref<41xf32, #tpu.memory_space<smem>>
    %144 = vector.broadcast %143 : f32 to vector<1x128xf32>
    %145 = arith.mulf %144, %142 : vector<1x128xf32>
    %146 = arith.addf %130, %145 : vector<1x128xf32>
    %c18 = arith.constant 18 : index
    %147 = memref.load %arg1[%c18] : memref<41xf32, #tpu.memory_space<smem>>
    %148 = vector.broadcast %147 : f32 to vector<1x128xf32>
    %149 = arith.mulf %148, %0 : vector<1x128xf32>
    %c19 = arith.constant 19 : index
    %150 = memref.load %arg1[%c19] : memref<41xf32, #tpu.memory_space<smem>>
    %151 = vector.broadcast %150 : f32 to vector<1x128xf32>
    %152 = arith.mulf %151, %1 : vector<1x128xf32>
    %153 = arith.addf %149, %152 : vector<1x128xf32>
    %c29 = arith.constant 29 : index
    %154 = memref.load %arg1[%c29] : memref<41xf32, #tpu.memory_space<smem>>
    %155 = vector.broadcast %154 : f32 to vector<1x128xf32>
    %156 = arith.addf %153, %155 : vector<1x128xf32>
    %cst_13 = arith.constant 0.000000e+00 : f32
    %157 = vector.broadcast %cst_13 : f32 to vector<1x128xf32>
    %158 = arith.maximumf %156, %157 : vector<1x128xf32>
    %c39 = arith.constant 39 : index
    %159 = memref.load %arg1[%c39] : memref<41xf32, #tpu.memory_space<smem>>
    %160 = vector.broadcast %159 : f32 to vector<1x128xf32>
    %161 = arith.mulf %160, %158 : vector<1x128xf32>
    %162 = arith.addf %146, %161 : vector<1x128xf32>
    %c40 = arith.constant 40 : index
    %163 = memref.load %arg1[%c40] : memref<41xf32, #tpu.memory_space<smem>>
    %164 = vector.broadcast %163 : f32 to vector<1x128xf32>
    %165 = arith.addf %162, %164 : vector<1x128xf32>
    %cst_14 = arith.constant 0.000000e+00 : f32
    %166 = vector.broadcast %cst_14 : f32 to vector<1x128xf32>
    %167 = arith.subf %166, %165 : vector<1x128xf32>
    %168 = math.exp %167 : vector<1x128xf32>
    %cst_15 = arith.constant 1.000000e+00 : f32
    %169 = vector.broadcast %cst_15 : f32 to vector<1x128xf32>
    %170 = arith.addf %169, %168 : vector<1x128xf32>
    %171 = tpu.reciprocal %170 : vector<1x128xf32> -> vector<1x128xf32>
    %c0_16 = arith.constant 0 : index
    %c0_17 = arith.constant 0 : index
    %172 = vector.load %arg3[%c0_16, %c0_17] : memref<1x128xf32, #tpu.memory_space<vmem>>, vector<1x128xf32>
    tpu.vector_store %arg3[%c0_16, %c0_17], %171 {strides = array<i32>} : memref<1x128xf32, #tpu.memory_space<vmem>>, vector<1x128xf32>,
    return
  }
  func.func @transform_0(%arg0: i32) -> i32 {
    %c0_i32 = arith.constant 0 : i32
    %c0_i32_0 = arith.constant 0 : i32
    return %c0_i32 : i32
  }
  func.func @transform_1(%arg0: i32) -> (i32, i32) {
    %c0_i32 = arith.constant 0 : i32
    %c0_i32_0 = arith.constant 0 : i32
    return %c0_i32, %arg0 : i32, i32
  }
  func.func @transform_2(%arg0: i32) -> (i32, i32) {
    %c0_i32 = arith.constant 0 : i32
    %c0_i32_0 = arith.constant 0 : i32
    return %c0_i32, %arg0 : i32, i32
  }
}

</mosaic_0001>

<llo_original>
// kernel: tpu_custom_call.1
$region0: #{tpu_custom_call.1}
  #allocation0 [shape = 'u32[]', space=smem, size = 0x4, offset = 0x4, fixed_abs, tag = 'smem constant byte address 0x4 - core index']
  #allocation1 [shape = 'u32[144,128]{1,0:T(1,128)}', space=vmem, size = 0x12000, scoped, tag = 'internal scratch']
  %s0 = inlined_call_operand.hbm [shape: f32[41], index: 0, kind: input, shape index: {}]
  %s1 = inlined_call_operand.hbm [shape: f32[2,128], index: 1, kind: input, shape index: {}]
  %s2 = inlined_call_operand.hbm [shape: f32[1,128], index: 2, kind: output, shape index: {}]
  %s3 = sld [smem:[#allocation0]]
  $region26: #{tpu_custom_call.1} parent=0
    _
  %s5 = ssub.s32 1, %s3
  %s6 = scalar_select 0, %s5, %s3
  $region1: #{tpu_custom_call.1} parent=0
    #allocation2 [shape = 'u8[512]{0}', space=smem, size = 0x200, scoped, tag = 'input window, operand 0, single buffered']
    #allocation3 [shape = 's32[1]{0}', space=sflag, size = 0x4, scoped, tag = 'scoped memory for tpu_custom_call.1']
    #allocation4 [shape = 's32[1]{0}', space=sflag, size = 0x4, scoped, tag = 'scoped memory for tpu_custom_call.1']
    #allocation5 [shape = 's32[1]{0}', space=sflag, size = 0x4, scoped, tag = 'scoped memory for tpu_custom_call.1']
    #allocation6 [shape = 'u8[1024]{0}', space=vmem, size = 0x400, scoped, tag = 'input window, operand 1, single buffered']
    #allocation7 [shape = 'u8[512]{0}', space=vmem, size = 0x400, scoped, tag = 'output window, operand 0, single buffered']
    %7 = vsyncpa [#allocation5], 0
    %8 = vsyncpa [#allocation3], 0
    %9 = vsyncpa [#allocation4], 0
    // Predicated region
    $region2: #{tpu_custom_call.1} parent=1 // pred_check
      _
    $region3: #{tpu_custom_call.1} parent=1 // pred_check_branch
      %11 = sbr.rel (0) target = $region5
    $region4: #{tpu_custom_call.1} parent=1 // pred_region
      %s13 = ssub.s32 16, 16
      %14 = vsyncadd [#allocation5], %s13
      %17 = dma.hbm_to_smem %s0, 16, [#allocation2], [#allocation5]
    $region5: #{tpu_custom_call.1} parent=1 // pred_fallthru
      _
    // Predicated region
    $region6: #{tpu_custom_call.1} parent=1 // pred_check
      _
    $region7: #{tpu_custom_call.1} parent=1 // pred_check_branch
      %19 = sbr.rel (0) target = $region9
    $region8: #{tpu_custom_call.1} parent=1 // pred_region
      %s21 = ssub.s32 32, 32
      %22 = vsyncadd [#allocation3], %s21
      %s24 = sshll.u32 [#allocation6], 4
      %s25 = int_to_ptr.vmem [resolvable:$true] %s24
      %27 = dma.hbm_to_vmem [thread:$0]  %s1, 32, %s25, [#allocation3]
    $region9: #{tpu_custom_call.1} parent=1 // pred_fallthru
      _
    // Predicated region
    $region10: #{tpu_custom_call.1} parent=1 // pred_check
      _
    $region11: #{tpu_custom_call.1} parent=1 // pred_check_branch
      %29 = sbr.rel (0) target = $region13
    $region12: #{tpu_custom_call.1} parent=1 // pred_region
      %30 = dma.done [#allocation5], 16
    $region13: #{tpu_custom_call.1} parent=1 // pred_fallthru
      _
    // Predicated region
    $region14: #{tpu_custom_call.1} parent=1 // pred_check
      _
    $region15: #{tpu_custom_call.1} parent=1 // pred_check_branch
      %32 = sbr.rel (0) target = $region17
    $region16: #{tpu_custom_call.1} parent=1 // pred_region
      %33 = dma.done [#allocation3], 32
    $region17: #{tpu_custom_call.1} parent=1 // pred_fallthru
      _
    %34 = sfence
    %v35 = vld [vmem:[#allocation6] sm:$0x1]
    %v36 = vld [vmem:[#allocation6 + $0x1] sm:$0x1]
    %s37 = sld [smem:[#allocation2]]
    %v38 = vstv %s37
    %v39 = vmul.f32 %v38, %v35
    %s40 = sld [smem:[#allocation2 + $0x1]]
    %v41 = vstv %s40
    %v42 = vmul.f32 %v41, %v36
    %v43 = vadd.f32 %v39, %v42
    %s44 = sld [smem:[#allocation2 + $0x14]]
    %v45 = vstv %s44
    %v46 = vadd.f32 %v43, %v45
    %v47 = vmax.f32 %v46, 0.0
    %s48 = sld [smem:[#allocation2 + $0x1e]]
    %v49 = vstv %s48
    %v50 = vmul.f32 %v49, %v47
    %v51 = vadd.f32 %v50, 0.0
    %s52 = sld [smem:[#allocation2 + $0x2]]
    %v53 = vstv %s52
    %v54 = vmul.f32 %v53, %v35
    %s55 = sld [smem:[#allocation2 + $0x3]]
    %v56 = vstv %s55
    %v57 = vmul.f32 %v56, %v36
    %v58 = vadd.f32 %v54, %v57
    %s59 = sld [smem:[#allocation2 + $0x15]]
    %v60 = vstv %s59
    %v61 = vadd.f32 %v58, %v60
    %v62 = vmax.f32 %v61, 0.0
    %s63 = sld [smem:[#allocation2 + $0x1f]]
    %v64 = vstv %s63
    %v65 = vmul.f32 %v64, %v62
    %v66 = vadd.f32 %v51, %v65
    %s67 = sld [smem:[#allocation2 + $0x4]]
    %v68 = vstv %s67
    %v69 = vmul.f32 %v68, %v35
    %s70 = sld [smem:[#allocation2 + $0x5]]
    %v71 = vstv %s70
    %v72 = vmul.f32 %v71, %v36
    %v73 = vadd.f32 %v69, %v72
    %s74 = sld [smem:[#allocation2 + $0x16]]
    %v75 = vstv %s74
    %v76 = vadd.f32 %v73, %v75
    %v77 = vmax.f32 %v76, 0.0
    %s78 = sld [smem:[#allocation2 + $0x20]]
    %v79 = vstv %s78
    %v80 = vmul.f32 %v79, %v77
    %v81 = vadd.f32 %v66, %v80
    %s82 = sld [smem:[#allocation2 + $0x6]]
    %v83 = vstv %s82
    %v84 = vmul.f32 %v83, %v35
    %s85 = sld [smem:[#allocation2 + $0x7]]
    %v86 = vstv %s85
    %v87 = vmul.f32 %v86, %v36
    %v88 = vadd.f32 %v84, %v87
    %s89 = sld [smem:[#allocation2 + $0x17]]
    %v90 = vstv %s89
    %v91 = vadd.f32 %v88, %v90
    %v92 = vmax.f32 %v91, 0.0
    %s93 = sld [smem:[#allocation2 + $0x21]]
    %v94 = vstv %s93
    %v95 = vmul.f32 %v94, %v92
    %v96 = vadd.f32 %v81, %v95
    %s97 = sld [smem:[#allocation2 + $0x8]]
    %v98 = vstv %s97
    %v99 = vmul.f32 %v98, %v35
    %s100 = sld [smem:[#allocation2 + $0x9]]
    %v101 = vstv %s100
    %v102 = vmul.f32 %v101, %v36
    %v103 = vadd.f32 %v99, %v102
    %s104 = sld [smem:[#allocation2 + $0x18]]
    %v105 = vstv %s104
    %v106 = vadd.f32 %v103, %v105
    %v107 = vmax.f32 %v106, 0.0
    %s108 = sld [smem:[#allocation2 + $0x22]]
    %v109 = vstv %s108
    %v110 = vmul.f32 %v109, %v107
    %v111 = vadd.f32 %v96, %v110
    %s112 = sld [smem:[#allocation2 + $0xa]]
    %v113 = vstv %s112
    %v114 = vmul.f32 %v113, %v35
    %s115 = sld [smem:[#allocation2 + $0xb]]
    %v116 = vstv %s115
    %v117 = vmul.f32 %v116, %v36
    %v118 = vadd.f32 %v114, %v117
    %s119 = sld [smem:[#allocation2 + $0x19]]
    %v120 = vstv %s119
    %v121 = vadd.f32 %v118, %v120
    %v122 = vmax.f32 %v121, 0.0
    %s123 = sld [smem:[#allocation2 + $0x23]]
    %v124 = vstv %s123
    %v125 = vmul.f32 %v124, %v122
    %v126 = vadd.f32 %v111, %v125
    %s127 = sld [smem:[#allocation2 + $0xc]]
    %v128 = vstv %s127
    %v129 = vmul.f32 %v128, %v35
    %s130 = sld [smem:[#allocation2 + $0xd]]
    %v131 = vstv %s130
    %v132 = vmul.f32 %v131, %v36
    %v133 = vadd.f32 %v129, %v132
    %s134 = sld [smem:[#allocation2 + $0x1a]]
    %v135 = vstv %s134
    %v136 = vadd.f32 %v133, %v135
    %v137 = vmax.f32 %v136, 0.0
    %s138 = sld [smem:[#allocation2 + $0x24]]
    %v139 = vstv %s138
    %v140 = vmul.f32 %v139, %v137
    %v141 = vadd.f32 %v126, %v140
    %s142 = sld [smem:[#allocation2 + $0xe]]
    %v143 = vstv %s142
    %v144 = vmul.f32 %v143, %v35
    %s145 = sld [smem:[#allocation2 + $0xf]]
    %v146 = vstv %s145
    %v147 = vmul.f32 %v146, %v36
    %v148 = vadd.f32 %v144, %v147
    %s149 = sld [smem:[#allocation2 + $0x1b]]
    %v150 = vstv %s149
    %v151 = vadd.f32 %v148, %v150
    %v152 = vmax.f32 %v151, 0.0
    %s153 = sld [smem:[#allocation2 + $0x25]]
    %v154 = vstv %s153
    %v155 = vmul.f32 %v154, %v152
    %v156 = vadd.f32 %v141, %v155
    %s157 = sld [smem:[#allocation2 + $0x10]]
    %v158 = vstv %s157
    %v159 = vmul.f32 %v158, %v35
    %s160 = sld [smem:[#allocation2 + $0x11]]
    %v161 = vstv %s160
    %v162 = vmul.f32 %v161, %v36
    %v163 = vadd.f32 %v159, %v162
    %s164 = sld [smem:[#allocation2 + $0x1c]]
    %v165 = vstv %s164
    %v166 = vadd.f32 %v163, %v165
    %v167 = vmax.f32 %v166, 0.0
    %s168 = sld [smem:[#allocation2 + $0x26]]
    %v169 = vstv %s168
    %v170 = vmul.f32 %v169, %v167
    %v171 = vadd.f32 %v156, %v170
    %s172 = sld [smem:[#allocation2 + $0x12]]
    %v173 = vstv %s172
    %v174 = vmul.f32 %v173, %v35
    %s175 = sld [smem:[#allocation2 + $0x13]]
    %v176 = vstv %s175
    %v177 = vmul.f32 %v176, %v36
    %v178 = vadd.f32 %v174, %v177
    %s179 = sld [smem:[#allocation2 + $0x1d]]
    %v180 = vstv %s179
    %v181 = vadd.f32 %v178, %v180
    %v182 = vmax.f32 %v181, 0.0
    %s183 = sld [smem:[#allocation2 + $0x27]]
    %v184 = vstv %s183
    %v185 = vmul.f32 %v184, %v182
    %v186 = vadd.f32 %v171, %v185
    %s187 = sld [smem:[#allocation2 + $0x28]]
    %v188 = vstv %s187
    %v189 = vadd.f32 %v186, %v188
    %v190 = vsub.f32 0.0, %v189
    %v191 = vmul.f32 %v190, 1.442695
    %v192 = vpow.pop %v191
    %v193 = vadd.f32 %v192, 1.0
    %v194 = vrcp.pop %v193
    %195 = vst [vmem:[#allocation7] sm:$0x1] %v194
    // Predicated region
    $region18: #{tpu_custom_call.1} parent=1 // pred_check
      _
    $region19: #{tpu_custom_call.1} parent=1 // pred_check_branch
      %197 = sbr.rel (0) target = $region21
    $region20: #{tpu_custom_call.1} parent=1 // pred_region
      %s199 = ssub.s32 16, 16
      %200 = vsyncadd [#allocation4], %s199
      %s202 = sshll.u32 [#allocation7], 4
      %s203 = int_to_ptr.vmem [resolvable:$true] %s202
      %205 = dma.vmem_to_hbm [thread:$0]  %s203, 16, %s2, [#allocation4]
    $region21: #{tpu_custom_call.1} parent=1 // pred_fallthru
      _
    // Predicated region
    $region22: #{tpu_custom_call.1} parent=1 // pred_check
      _
    $region23: #{tpu_custom_call.1} parent=1 // pred_check_branch
      %207 = sbr.rel (0) target = $region25
    $region24: #{tpu_custom_call.1} parent=1 // pred_region
      %208 = dma.done [#allocation4], 16
    $region25: #{tpu_custom_call.1} parent=1 // pred_fallthru
      _
    %209 = vsyncpa [#allocation3], 1
    %210 = vsyncpa [#allocation4], 1
    %211 = vsyncpa [#allocation5], 1

</llo_original>
